<compile_context>
chip_gen: v6e
topology: v6e:2x2x1
jax: 0.10.0
libtpu: 0.0.40
codegen_flags: <defaults>
</compile_context>

<pallas_src>
import jax
import jax.numpy as jnp
from jax.experimental import pallas as pl
from jax.experimental.pallas import tpu as pltpu

LANE = 128
SUBLANE = 8
SINGLE_BLOCK_MAX = 256  # batches up to this size use the grid-less fast path


def _round_up(n, m):
    return ((n + m - 1) // m) * m


def dqn_kernel(x_ref, w1_ref, b1_ref, w2_ref, b2_ref, o_ref):
    # x arrives as f32; cast to bf16 in-register (no extra HBM pass).
    x = x_ref[...].astype(jnp.bfloat16)
    # Layer 1: bf16 operands on the MXU, f32 accumulation.
    h = jnp.dot(x, w1_ref[...], preferred_element_type=jnp.float32)
    # f32 bias + ReLU epilogue on the VPU (kept f32 so v5e is not emulating bf16).
    h = jnp.maximum(h + b1_ref[...], 0.0)
    # Layer 2: cast activations to bf16 for the MXU, accumulate in f32.
    out = jnp.dot(h.astype(jnp.bfloat16), w2_ref[...],
                  preferred_element_type=jnp.float32)
    o_ref[...] = (out + b2_ref[...]).astype(o_ref.dtype)


def prepare_dqn_params(w1, b1, w2, b2):
    """One-time parameter prep: pad hidden / action dims to the 128-lane
    boundary and cast weights to bf16.  Call once per parameter update and
    reuse the result across forward calls (action selection + replay batches).

    Zero-padding is exact: relu(0) = 0 and the padded rows of W2 are zero.
    """
    n_obs, hidden = w1.shape
    n_actions = w2.shape[1]
    hid_p = _round_up(hidden, LANE)
    act_p = _round_up(n_actions, LANE)

    w1_p = jnp.pad(w1, ((0, 0), (0, hid_p - hidden))).astype(jnp.bfloat16)
    b1_p = jnp.pad(b1.reshape(1, -1).astype(jnp.float32),
                   ((0, 0), (0, hid_p - hidden)))
    w2_p = jnp.pad(w2, ((0, hid_p - hidden), (0, act_p - n_actions))
                   ).astype(jnp.bfloat16)
    b2_p = jnp.pad(b2.reshape(1, -1).astype(jnp.float32),
                   ((0, 0), (0, act_p - n_actions)))
    return (w1_p, b1_p, w2_p, b2_p, n_actions)


def dqn_forward(x, params, *, block_b=2048, out_dtype=jnp.float32):
    """x: (B, n_obs) f32; params: output of prepare_dqn_params.
    Returns (B, n_actions) in out_dtype (default f32)."""
    w1_p, b1_p, w2_p, b2_p, n_actions = params
    B, n_obs = x.shape
    hid_p = w1_p.shape[1]
    act_p = w2_p.shape[1]

    cost = pl.CostEstimate(
        flops=2 * B * (n_obs * hid_p + hid_p * act_p),
        transcendentals=0,
        bytes_accessed=(B * n_obs * x.dtype.itemsize
                        + B * act_p * jnp.dtype(out_dtype).itemsize
                        + w1_p.size * 2 + w2_p.size * 2
                        + b1_p.size * 4 + b2_p.size * 4),
    )

    if B <= SINGLE_BLOCK_MAX:
        # Small (action-selection) batches: grid-less call, whole arrays
        # resident in VMEM, zero pipeline bookkeeping, no padding of x at all.
        vmem = pl.BlockSpec(memory_space=pltpu.MemorySpace.VMEM)
        out_p = pl.pallas_call(
            dqn_kernel,
            out_shape=jax.ShapeDtypeStruct((B, act_p), out_dtype),
            in_specs=[vmem] * 5,
            out_specs=vmem,
            cost_estimate=cost,
        )(x, w1_p, b1_p, w2_p, b2_p)
        return out_p[:, :n_actions]

    # Large (replay-buffer) batches: tile the batch axis.  Weights stay
    # VMEM-resident across grid steps (index_map -> (0, 0)).
    b_sub = _round_up(B, SUBLANE)
    x_p = x if b_sub == B else jnp.pad(x, ((0, b_sub - B), (0, 0)))

    # Ensure >= 2 grid steps so both v7x TensorCores get work, cap at block_b;
    # the grid uses cdiv so the last block may be partial (writes are masked).
    block_b = max(SUBLANE,
                  min(_round_up(block_b, SUBLANE),
                      _round_up(pl.cdiv(b_sub, 2), SUBLANE)))
    grid = (pl.cdiv(b_sub, block_b),)

    out_p = pl.pallas_call(
        dqn_kernel,
        out_shape=jax.ShapeDtypeStruct((b_sub, act_p), out_dtype),
        grid=grid,
        in_specs=[
            pl.BlockSpec((block_b, n_obs), lambda i: (i, 0)),
            pl.BlockSpec((n_obs, hid_p), lambda i: (0, 0)),
            pl.BlockSpec((1, hid_p), lambda i: (0, 0)),
            pl.BlockSpec((hid_p, act_p), lambda i: (0, 0)),
            pl.BlockSpec((1, act_p), lambda i: (0, 0)),
        ],
        out_specs=pl.BlockSpec((block_b, act_p), lambda i: (i, 0)),
        compiler_params=pltpu.CompilerParams(
            dimension_semantics=("parallel",)),
        cost_estimate=cost,
    )(x_p, w1_p, b1_p, w2_p, b2_p)
    return out_p[:B, :n_actions]


if __name__ == "__main__":
    # Shapes implied by the module: hidden = 104 (fixed by DQN); n_observations
    # and n_actions are env-dependent stand-ins; batch = 2 for action selection.
    B, n_obs, hidden, n_actions = 2, 32, 104, 16

    key = jax.random.PRNGKey(0)
    kx, k1, k2, k3, k4 = jax.random.split(key, 5)

    x = jax.random.normal(kx, (B, n_obs), dtype=jnp.float32)

    # PyTorch-style Linear init: U(-1/sqrt(fan_in), 1/sqrt(fan_in)).
    bound1 = 1.0 / float(n_obs) ** 0.5
    w1 = jax.random.uniform(k1, (n_obs, hidden), jnp.float32, -bound1, bound1)
    b1 = jax.random.uniform(k2, (hidden,), jnp.float32, -bound1, bound1)
    bound2 = 1.0 / float(hidden) ** 0.5
    w2 = jax.random.uniform(k3, (hidden, n_actions), jnp.float32, -bound2, bound2)
    b2 = jax.random.uniform(k4, (n_actions,), jnp.float32, -bound2, bound2)

    # One-time parameter prep (hoisted out of the per-call forward).
    params = prepare_dqn_params(w1, b1, w2, b2)

    def ref_fwd(xf):
        # Same bf16-on-MXU / f32-accumulate recipe as the kernel.
        h = jnp.dot(xf.astype(jnp.bfloat16), w1.astype(jnp.bfloat16),
                    preferred_element_type=jnp.float32) + b1
        h = jnp.maximum(h, 0.0)
        return jnp.dot(h.astype(jnp.bfloat16), w2.astype(jnp.bfloat16),
                       preferred_element_type=jnp.float32) + b2

    # 1) Tiny batch -> grid-less single-block path.
    out_small = jax.block_until_ready(dqn_forward(x, params))
    assert out_small.shape == (B, n_actions)
    assert jnp.allclose(out_small, ref_fwd(x), atol=1e-2, rtol=1e-2)
    # Sanity vs. the original module's full-f32 math (bf16 MXU rounding only).
    ref_f32 = jnp.maximum(x @ w1 + b1, 0.0) @ w2 + b2
    assert jnp.allclose(out_small, ref_f32, atol=6e-2, rtol=6e-2)

    # 2) Replay-buffer-style batch -> batch-tiled "parallel" grid path
    #    (block_b clamped so the grid has 2 steps).
    B_big = 384
    x_big = jax.random.normal(jax.random.PRNGKey(1), (B_big, n_obs), jnp.float32)
    out_big = jax.block_until_ready(dqn_forward(x_big, params))
    assert out_big.shape == (B_big, n_actions)
    assert jnp.allclose(out_big, ref_fwd(x_big), atol=1e-2, rtol=1e-2)

    # 3) Batch that does not divide evenly into blocks -> partial last block
    #    (OOB reads masked on write; results still exact).
    B_odd = 300
    x_odd = jax.random.normal(jax.random.PRNGKey(2), (B_odd, n_obs), jnp.float32)
    out_odd = jax.block_until_ready(dqn_forward(x_odd, params))
    assert out_odd.shape == (B_odd, n_actions)
    assert jnp.allclose(out_odd, ref_fwd(x_odd), atol=1e-2, rtol=1e-2)

    print("KERNEL_OK")
</pallas_src>

<mosaic_0001>
module attributes {stable_mosaic.version = 11 : i64} {
  func.func @dqn_kernel(%arg0: memref<2x32xf32, #tpu.memory_space<vmem>>, %arg1: memref<32x128xbf16, #tpu.memory_space<vmem>>, %arg2: memref<1x128xf32, #tpu.memory_space<vmem>>, %arg3: memref<128x128xbf16, #tpu.memory_space<vmem>>, %arg4: memref<1x128xf32, #tpu.memory_space<vmem>>, %arg5: memref<2x128xf32, #tpu.memory_space<vmem>>) attributes {dimension_semantics = [], scalar_prefetch = 0 : i64, scratch_operands = 0 : i64, tpu.core_type = #tpu.core_type<tc>} {
    %c0 = arith.constant 0 : index
    %c0_0 = arith.constant 0 : index
    %0 = vector.load %arg0[%c0, %c0_0] : memref<2x32xf32, #tpu.memory_space<vmem>>, vector<2x32xf32>
    %1 = arith.truncf %0 : vector<2x32xf32> to vector<2x32xbf16>
    %c0_1 = arith.constant 0 : index
    %c0_2 = arith.constant 0 : index
    %2 = vector.load %arg1[%c0_1, %c0_2] : memref<32x128xbf16, #tpu.memory_space<vmem>>, vector<32x128xbf16>
    %cst = arith.constant dense<0.000000e+00> : vector<2x128xf32>
    %3 = tpu.matmul %1, %2, %cst {dimension_numbers = #tpu.dot_dimension_numbers<[1], [0], [0], [1], [0, 0, 1, 1], [], []>} : vector<2x32xbf16>, vector<32x128xbf16>, vector<2x128xf32> -> vector<2x128xf32>
    %c0_3 = arith.constant 0 : index
    %c0_4 = arith.constant 0 : index
    %4 = vector.load %arg2[%c0_3, %c0_4] : memref<1x128xf32, #tpu.memory_space<vmem>>, vector<1x128xf32>
    %5 = vector.broadcast %4 : vector<1x128xf32> to vector<2x128xf32>
    %6 = arith.addf %3, %5 : vector<2x128xf32>
    %cst_5 = arith.constant 0.000000e+00 : f32
    %7 = vector.broadcast %cst_5 : f32 to vector<2x128xf32>
    %8 = arith.maximumf %6, %7 : vector<2x128xf32>
    %9 = arith.truncf %8 : vector<2x128xf32> to vector<2x128xbf16>
    %c0_6 = arith.constant 0 : index
    %c0_7 = arith.constant 0 : index
    %10 = vector.load %arg3[%c0_6, %c0_7] : memref<128x128xbf16, #tpu.memory_space<vmem>>, vector<128x128xbf16>
    %cst_8 = arith.constant dense<0.000000e+00> : vector<2x128xf32>
    %11 = tpu.matmul %9, %10, %cst_8 {dimension_numbers = #tpu.dot_dimension_numbers<[1], [0], [0], [1], [0, 0, 1, 1], [], []>} : vector<2x128xbf16>, vector<128x128xbf16>, vector<2x128xf32> -> vector<2x128xf32>
    %c0_9 = arith.constant 0 : index
    %c0_10 = arith.constant 0 : index
    %12 = vector.load %arg4[%c0_9, %c0_10] : memref<1x128xf32, #tpu.memory_space<vmem>>, vector<1x128xf32>
    %13 = vector.broadcast %12 : vector<1x128xf32> to vector<2x128xf32>
    %14 = arith.addf %11, %13 : vector<2x128xf32>
    %c0_11 = arith.constant 0 : index
    %c0_12 = arith.constant 0 : index
    %15 = vector.load %arg5[%c0_11, %c0_12] : memref<2x128xf32, #tpu.memory_space<vmem>>, vector<2x128xf32>
    tpu.vector_store %arg5[%c0_11, %c0_12], %14 {strides = array<i32>} : memref<2x128xf32, #tpu.memory_space<vmem>>, vector<2x128xf32>,
    return
  }
}

</mosaic_0001>

<llo_original>
// kernel: tpu_custom_call.1
$region0: #{tpu_custom_call.1}
  #allocation0 [shape = 'u32[]', space=smem, size = 0x4, offset = 0x4, fixed_abs, tag = 'smem constant byte address 0x4 - core index']
  #allocation1 [shape = 'u32[144,128]{1,0:T(1,128)}', space=vmem, size = 0x12000, scoped, tag = 'internal scratch']
  %s0 = inlined_call_operand.hbm [shape: f32[2,32], index: 0, kind: input, shape index: {}]
  %s1 = inlined_call_operand.hbm [shape: bf16[32,128], index: 1, kind: input, shape index: {}]
  %s2 = inlined_call_operand.vmem [shape: f32[1,128], index: 2, kind: input, shape index: {}]
  %s3 = inlined_call_operand.hbm [shape: bf16[128,128], index: 3, kind: input, shape index: {}]
  %s4 = inlined_call_operand.vmem [shape: f32[1,128], index: 4, kind: input, shape index: {}]
  %s5 = inlined_call_operand.hbm [shape: f32[2,128], index: 5, kind: output, shape index: {}]
  %s6 = sld [smem:[#allocation0]]
  $region42: #{tpu_custom_call.1} parent=0
    _
  %s8 = ssub.s32 1, %s6
  %s9 = scalar_select 0, %s8, %s6
  $region1: #{tpu_custom_call.1} parent=0
    #allocation2 [shape = 'u8[1024]{0}', space=vmem, size = 0x400, scoped, tag = 'input window, operand 0, single buffered']
    #allocation3 [shape = 's32[1]{0}', space=sflag, size = 0x4, scoped, tag = 'scoped memory for tpu_custom_call.1']
    #allocation4 [shape = 's32[1]{0}', space=sflag, size = 0x4, scoped, tag = 'scoped memory for tpu_custom_call.1']
    #allocation5 [shape = 'u8[8192]{0}', space=vmem, size = 0x2000, scoped, tag = 'input window, operand 1, single buffered']
    #allocation6 [shape = 's32[1]{0}', space=sflag, size = 0x4, scoped, tag = 'scoped memory for tpu_custom_call.1']
    #allocation7 [shape = 'u8[32768]{0}', space=vmem, size = 0x8000, scoped, tag = 'input window, operand 3, single buffered']
    #allocation8 [shape = 'u8[1024]{0}', space=vmem, size = 0x400, scoped, tag = 'output window, operand 0, single buffered']
    %10 = vsyncpa [#allocation3], 0
    %11 = vsyncpa [#allocation6], 0
    %12 = vsyncpa [#allocation4], 0
    // Predicated region
    $region2: #{tpu_custom_call.1} parent=1 // pred_check
      _
    $region3: #{tpu_custom_call.1} parent=1 // pred_check_branch
      %14 = sbr.rel (0) target = $region5
    $region4: #{tpu_custom_call.1} parent=1 // pred_region
      %s16 = ssub.s32 32, 32
      %17 = vsyncadd [#allocation3], %s16
      %s19 = sshll.u32 [#allocation2], 4
      %s20 = int_to_ptr.vmem [resolvable:$true] %s19
      %22 = dma.hbm_to_vmem [thread:$0]  %s0, 32, %s20, [#allocation3]
    $region5: #{tpu_custom_call.1} parent=1 // pred_fallthru
      _
    // Predicated region
    $region6: #{tpu_custom_call.1} parent=1 // pred_check
      _
    $region7: #{tpu_custom_call.1} parent=1 // pred_check_branch
      %24 = sbr.rel (0) target = $region9
    $region8: #{tpu_custom_call.1} parent=1 // pred_region
      %s26 = ssub.s32 256, 256
      %27 = vsyncadd [#allocation6], %s26
      %s28 = sshll.u32 [#allocation5], 4
      %s29 = int_to_ptr.vmem [resolvable:$true] %s28
      %34 = dma.hbm_to_vmem [thread:$0]  %s1, 256, %s29, [#allocation6], 64, 64, 4
    $region9: #{tpu_custom_call.1} parent=1 // pred_fallthru
      _
    // Predicated region
    $region10: #{tpu_custom_call.1} parent=1 // pred_check
      _
    $region11: #{tpu_custom_call.1} parent=1 // pred_check_branch
      %36 = sbr.rel (0) target = $region13
    $region12: #{tpu_custom_call.1} parent=1 // pred_region
      _
    $region13: #{tpu_custom_call.1} parent=1 // pred_fallthru
      _
    // Predicated region
    $region14: #{tpu_custom_call.1} parent=1 // pred_check
      _
    $region15: #{tpu_custom_call.1} parent=1 // pred_check_branch
      %38 = sbr.rel (0) target = $region17
    $region16: #{tpu_custom_call.1} parent=1 // pred_region
      %s40 = ssub.s32 1024, 1024
      %41 = vsyncadd [#allocation6], %s40
      %s42 = sshll.u32 [#allocation7], 4
      %s43 = int_to_ptr.vmem [resolvable:$true] %s42
      %48 = dma.hbm_to_vmem [thread:$0]  %s3, 1024, %s43, [#allocation6], 64, 64, 4
    $region17: #{tpu_custom_call.1} parent=1 // pred_fallthru
      _
    // Predicated region
    $region18: #{tpu_custom_call.1} parent=1 // pred_check
      _
    $region19: #{tpu_custom_call.1} parent=1 // pred_check_branch
      %50 = sbr.rel (0) target = $region21
    $region20: #{tpu_custom_call.1} parent=1 // pred_region
      _
    $region21: #{tpu_custom_call.1} parent=1 // pred_fallthru
      _
    // Predicated region
    $region22: #{tpu_custom_call.1} parent=1 // pred_check
      _
    $region23: #{tpu_custom_call.1} parent=1 // pred_check_branch
      %52 = sbr.rel (0) target = $region25
    $region24: #{tpu_custom_call.1} parent=1 // pred_region
      %53 = dma.done [#allocation3], 32
    $region25: #{tpu_custom_call.1} parent=1 // pred_fallthru
      _
    // Predicated region
    $region26: #{tpu_custom_call.1} parent=1 // pred_check
      _
    $region27: #{tpu_custom_call.1} parent=1 // pred_check_branch
      %55 = sbr.rel (0) target = $region29
    $region28: #{tpu_custom_call.1} parent=1 // pred_region
      %56 = dma.done [#allocation6], 256
    $region29: #{tpu_custom_call.1} parent=1 // pred_fallthru
      _
    // Predicated region
    $region30: #{tpu_custom_call.1} parent=1 // pred_check
      _
    $region31: #{tpu_custom_call.1} parent=1 // pred_check_branch
      %58 = sbr.rel (0) target = $region33
    $region32: #{tpu_custom_call.1} parent=1 // pred_region
      %59 = dma.done [#allocation6], 1024
    $region33: #{tpu_custom_call.1} parent=1 // pred_fallthru
      _
    %v61 = vld [vmem:[#allocation2] sm:$0x3]
    %v62 = vpack.c.bf16 %v61, %v61
    %v63 = vld [vmem:[#allocation5] sm:$0xf]
    %v64 = vld [vmem:[#allocation5 + $0x4] sm:$0xf]
    %v65 = vld [vmem:[#allocation5 + $0x8] sm:$0xf]
    %v66 = vld [vmem:[#allocation5 + $0xc] sm:$0xf]
    %v67 = vld [vmem:[%s2] sm:$0x1]
    %v69 = vlaneseq
    %v70 = vshrl.u32 %v69, 7
    %v71 = vsub.s32 0, %v70
    %v72 = vrot.slane %v67, %v71
    %v78 = vunpack.c.l.b16 %v63
    %v79 = vunpack.c.l.b16 %v64
    %v80 = vunpack.c.l.b16 %v65
    %v81 = vunpack.c.l.b16 %v66
    %v82 = vpack.c.b16 %v79, %v78
    %v83 = vpack.c.b16 %v81, %v80
    %vm86 = vcmask 261120
    %v88 = vsel %vm86, %v62, 0
    %90 = vmatprep.subr.bf16.mxu0 0
    %91 = vmatpush1.bf16.msra.mxu0 0
    %92 = vmatprep.subr.bf16.mxu0 0
    %93 = vmatpush1.bf16.msra.mxu0 0
    %94 = vmatprep.subr.bf16.mxu0 0
    %95 = vmatpush1.bf16.msra.mxu0 0
    %96 = vmatprep.subr.bf16.mxu0 0
    %97 = vmatpush1.bf16.msra.mxu0 0
    %98 = vmatprep.subr.bf16.mxu0 0
    %99 = vmatpush1.bf16.msra.mxu0 0
    %100 = vmatprep.subr.bf16.mxu0 0
    %101 = vmatpush1.bf16.msra.mxu0 0
    %102 = vmatprep.subr.bf16.mxu0 0
    %103 = vmatpush1.bf16.msra.mxu0 %v83
    %104 = vmatprep.subr.bf16.mxu0 0
    %105 = vmatpush1.bf16.msra.mxu0 %v82
    %106 = vmatprep.subr.bf16.mxu0 0
    %107 = vmatpush2.bf16.msra.mxu0 0
    %108 = vmatprep.subr.bf16.mxu0 0
    %109 = vmatpush2.bf16.msra.mxu0 0
    %110 = vmatprep.subr.bf16.mxu0 0
    %111 = vmatpush2.bf16.msra.mxu0 0
    %112 = vmatprep.subr.bf16.mxu0 0
    %113 = vmatpush2.bf16.msra.mxu0 0
    %114 = vmatprep.subr.bf16.mxu0 0
    %115 = vmatpush2.bf16.msra.mxu0 0
    %116 = vmatprep.subr.bf16.mxu0 0
    %117 = vmatpush2.bf16.msra.mxu0 0
    %118 = vmatprep.subr.bf16.mxu0 0
    %119 = vmatpush2.bf16.msra.mxu0 0
    %120 = vmatprep.subr.bf16.mxu0 0
    %121 = vmatpush2.bf16.msra.mxu0 0
    %122 = vmatprep.mubr.bf16.mxu0 0
    %123 = vmatmul.mubr.bf16.gmra.mxu0 %v88
    %v124 = vpop.f32.mrf.mxu0
    %v125 = vadd.f32 %v72, %v124
    %v126 = vpop.f32.mrf.mxu0
    %v127 = vpop.f32.mrf.mxu0
    %v128 = vpop.f32.mrf.mxu0
    %129 = vdwg.mxu0
    %v130 = vmax.f32 %v125, 0.0
    %v131 = vpack.c.bf16 %v130, %v130
    %v132 = vld [vmem:[#allocation7] sm:$0xf]
    %v133 = vld [vmem:[#allocation7 + $0x4] sm:$0xf]
    %v134 = vld [vmem:[#allocation7 + $0x8] sm:$0xf]
    %v135 = vld [vmem:[#allocation7 + $0xc] sm:$0xf]
    %v136 = vld [vmem:[#allocation7 + $0x10] sm:$0xf]
    %v137 = vld [vmem:[#allocation7 + $0x14] sm:$0xf]
    %v138 = vld [vmem:[#allocation7 + $0x18] sm:$0xf]
    %v139 = vld [vmem:[#allocation7 + $0x1c] sm:$0xf]
    %v140 = vld [vmem:[#allocation7 + $0x20] sm:$0xf]
    %v141 = vld [vmem:[#allocation7 + $0x24] sm:$0xf]
    %v142 = vld [vmem:[#allocation7 + $0x28] sm:$0xf]
    %v143 = vld [vmem:[#allocation7 + $0x2c] sm:$0xf]
    %v144 = vld [vmem:[#allocation7 + $0x30] sm:$0xf]
    %v145 = vld [vmem:[#allocation7 + $0x34] sm:$0xf]
    %v146 = vld [vmem:[#allocation7 + $0x38] sm:$0xf]
    %v147 = vld [vmem:[#allocation7 + $0x3c] sm:$0xf]
    %v148 = vld [vmem:[%s4] sm:$0x1]
    %v150 = vlaneseq
    %v151 = vshrl.u32 %v150, 7
    %v152 = vsub.s32 0, %v151
    %v153 = vrot.slane %v148, %v152
    %v171 = vunpack.c.l.b16 %v132
    %v172 = vunpack.c.l.b16 %v133
    %v173 = vunpack.c.l.b16 %v134
    %v174 = vunpack.c.l.b16 %v135
    %v175 = vunpack.c.l.b16 %v136
    %v176 = vunpack.c.l.b16 %v137
    %v177 = vunpack.c.l.b16 %v138
    %v178 = vunpack.c.l.b16 %v139
    %v179 = vunpack.c.l.b16 %v140
    %v180 = vunpack.c.l.b16 %v141
    %v181 = vunpack.c.l.b16 %v142
    %v182 = vunpack.c.l.b16 %v143
    %v183 = vunpack.c.l.b16 %v144
    %v184 = vunpack.c.l.b16 %v145
    %v185 = vunpack.c.l.b16 %v146
    %v186 = vunpack.c.l.b16 %v147
    %v187 = vpack.c.b16 %v172, %v171
    %v188 = vpack.c.b16 %v174, %v173
    %v189 = vpack.c.b16 %v176, %v175
    %v190 = vpack.c.b16 %v178, %v177
    %v191 = vpack.c.b16 %v180, %v179
    %v192 = vpack.c.b16 %v182, %v181
    %v193 = vpack.c.b16 %v184, %v183
    %v194 = vpack.c.b16 %v186, %v185
    %203 = vmatprep.subr.bf16.mxu0 0
    %204 = vmatpush1.bf16.msra.mxu0 %v194
    %205 = vmatprep.subr.bf16.mxu0 0
    %206 = vmatpush1.bf16.msra.mxu0 %v193
    %207 = vmatprep.subr.bf16.mxu0 0
    %208 = vmatpush1.bf16.msra.mxu0 %v192
    %209 = vmatprep.subr.bf16.mxu0 0
    %210 = vmatpush1.bf16.msra.mxu0 %v191
    %211 = vmatprep.subr.bf16.mxu0 0
    %212 = vmatpush1.bf16.msra.mxu0 %v190
    %213 = vmatprep.subr.bf16.mxu0 0
    %214 = vmatpush1.bf16.msra.mxu0 %v189
    %215 = vmatprep.subr.bf16.mxu0 0
    %216 = vmatpush1.bf16.msra.mxu0 %v188
    %217 = vmatprep.subr.bf16.mxu0 0
    %218 = vmatpush1.bf16.msra.mxu0 %v187
    %219 = vmatprep.subr.bf16.mxu0 0
    %220 = vmatpush2.bf16.msra.mxu0 0
    %221 = vmatprep.subr.bf16.mxu0 0
    %222 = vmatpush2.bf16.msra.mxu0 0
    %223 = vmatprep.subr.bf16.mxu0 0
    %224 = vmatpush2.bf16.msra.mxu0 0
    %225 = vmatprep.subr.bf16.mxu0 0
    %226 = vmatpush2.bf16.msra.mxu0 0
    %227 = vmatprep.subr.bf16.mxu0 0
    %228 = vmatpush2.bf16.msra.mxu0 0
    %229 = vmatprep.subr.bf16.mxu0 0
    %230 = vmatpush2.bf16.msra.mxu0 0
    %231 = vmatprep.subr.bf16.mxu0 0
    %232 = vmatpush2.bf16.msra.mxu0 0
    %233 = vmatprep.subr.bf16.mxu0 0
    %234 = vmatpush2.bf16.msra.mxu0 0
    %235 = vmatprep.mubr.bf16.mxu0 0
    %236 = vmatmul.mubr.bf16.gmra.mxu0 %v131
    %v237 = vpop.f32.mrf.mxu0
    %v238 = vadd.f32 %v153, %v237
    %v239 = vpop.f32.mrf.mxu0
    %v240 = vpop.f32.mrf.mxu0
    %v241 = vpop.f32.mrf.mxu0
    %242 = vdwg.mxu0
    %243 = vst [vmem:[#allocation8] sm:$0x3] %v238
    // Predicated region
    $region34: #{tpu_custom_call.1} parent=1 // pred_check
      _
    $region35: #{tpu_custom_call.1} parent=1 // pred_check_branch
      %245 = sbr.rel (0) target = $region37
    $region36: #{tpu_custom_call.1} parent=1 // pred_region
      %s247 = ssub.s32 32, 32
      %248 = vsyncadd [#allocation4], %s247
      %s250 = sshll.u32 [#allocation8], 4
      %s251 = int_to_ptr.vmem [resolvable:$true] %s250
      %253 = dma.vmem_to_hbm [thread:$0]  %s251, 32, %s5, [#allocation4]
    $region37: #{tpu_custom_call.1} parent=1 // pred_fallthru
      _
    // Predicated region
    $region38: #{tpu_custom_call.1} parent=1 // pred_check
      _
    $region39: #{tpu_custom_call.1} parent=1 // pred_check_branch
      %255 = sbr.rel (0) target = $region41
    $region40: #{tpu_custom_call.1} parent=1 // pred_region
      %256 = dma.done [#allocation4], 32
    $region41: #{tpu_custom_call.1} parent=1 // pred_fallthru
      _
    %257 = vsyncpa [#allocation3], 1
    %258 = vsyncpa [#allocation6], 1
    %259 = vsyncpa [#allocation4], 1

</llo_original>
